<compile_context>
chip_gen: v5e
topology: v5e:2x2
jax: 0.10.0
libtpu: 0.0.40
codegen_flags: <defaults>
</compile_context>

<pallas_src>
import functools

import jax
import jax.numpy as jnp
from jax.experimental import pallas as pl
from jax.experimental.pallas import tpu as pltpu


_MAX_BLOCK_ROWS = 2048   # keep lane-padded (rows, 1) vectors / masked stores bounded
_F32_TEMPS = 5           # live full-tile f32 temporaries inside the kernel body
_ROW_VECS = 8            # lane-padded (rows, 1) vectors (scratch + output + temps)


def _round_up(x, m):
    return (x + m - 1) // m * m


def _vmem_capacity_bytes():
    """Physical VMEM of the current TPU generation (conservative fallback)."""
    try:
        info = pltpu.get_tpu_info()
        for attr in ("vmem_capacity_bytes", "vmem_bytes"):
            cap = getattr(info, attr, None)
            if cap:
                return int(cap)
    except Exception:
        pass
    # Conservative: v7x has 64 MiB per TensorCore (v5e/v6e have 128 MiB).
    return 64 * 1024 * 1024


def _bytes_per_row(cols, in_itemsize):
    # 2 inputs x 2 pipeline buffers x itemsize + f32 temporaries + per-row vectors.
    return cols * (4 * in_itemsize + 4 * _F32_TEMPS) + _ROW_VECS * 128 * 4


def _pick_block_rows(n8, rows_cap):
    """Largest multiple of 8 <= rows_cap (and <= n8), minimizing padding waste."""
    cap = max(8, min(rows_cap, _MAX_BLOCK_ROWS, n8))
    cap = (cap // 8) * 8
    best, best_waste = cap, (-n8) % cap
    b = cap - 8
    while b >= max(8, cap // 2) and best_waste > 0:
        w = (-n8) % b
        if w < best_waste:
            best, best_waste = b, w
        b -= 8
    return best


def _ce_rows_kernel(s_ref, t_ref, o_ref, *, inv_t):
    """Single pass over the whole class dimension for one (block_rows, C) tile.

    Writes per-row sum_c(log_softmax(s/T) * softmax(t/T)) once (no RMW).
    """
    s = s_ref[...].astype(jnp.float32)
    t = t_ref[...].astype(jnp.float32)
    if inv_t != 1.0:
        s = s * inv_t
        t = t * inv_t

    s_shift = s - jnp.max(s, axis=1, keepdims=True)
    lse_s = jnp.log(jnp.sum(jnp.exp(s_shift), axis=1, keepdims=True))

    t_exp = jnp.exp(t - jnp.max(t, axis=1, keepdims=True))
    t_sum = jnp.sum(t_exp, axis=1, keepdims=True)

    dot = jnp.sum(s_shift * t_exp, axis=1, keepdims=True)

    # sum_c(log_p * q) = (sum_c s_shift * t_exp) / t_sum - lse_s   (sum_c q == 1)
    o_ref[...] = dot / t_sum - lse_s


def _ce_online_kernel(s_ref, t_ref, o_ref, m_s, z_s, m_t, z_t, dacc, *, inv_t):
    """Class-tiled path: online-softmax accumulation across the C grid axis."""
    j = pl.program_id(1)

    @pl.when(j == 0)
    def _():
        m_s[...] = jnp.full_like(m_s, -jnp.inf)
        z_s[...] = jnp.zeros_like(z_s)
        m_t[...] = jnp.full_like(m_t, -jnp.inf)
        z_t[...] = jnp.zeros_like(z_t)
        dacc[...] = jnp.zeros_like(dacc)

    s = s_ref[...].astype(jnp.float32)
    t = t_ref[...].astype(jnp.float32)
    if inv_t != 1.0:
        s = s * inv_t
        t = t * inv_t

    # Student: online log-sum-exp.
    m_s_new = jnp.maximum(m_s[...], jnp.max(s, axis=1, keepdims=True))
    z_s[...] = z_s[...] * jnp.exp(m_s[...] - m_s_new) + jnp.sum(
        jnp.exp(s - m_s_new), axis=1, keepdims=True)
    m_s[...] = m_s_new

    # Teacher: online softmax normalizer and student-weighted dot.
    m_t_new = jnp.maximum(m_t[...], jnp.max(t, axis=1, keepdims=True))
    beta = jnp.exp(m_t[...] - m_t_new)
    t_exp = jnp.exp(t - m_t_new)
    z_t[...] = z_t[...] * beta + jnp.sum(t_exp, axis=1, keepdims=True)
    dacc[...] = dacc[...] * beta + jnp.sum(s * t_exp, axis=1, keepdims=True)
    m_t[...] = m_t_new

    @pl.when(j == pl.num_programs(1) - 1)
    def _():
        # sum_c log_softmax(s)_c * softmax(t)_c = (sum_c s_c q_c) - m_s - log(z_s)
        o_ref[...] = dacc[...] / z_t[...] - m_s[...] - jnp.log(z_s[...])


def ce_loss(output_batch, teacher_outputs, temperature=1.0, *,
            vmem_budget_bytes=None):
    """Pallas implementation of CE_Loss.forward for (N, C) logit tensors."""
    N, C = output_batch.shape
    assert teacher_outputs.shape == (N, C)

    in_itemsize = max(jnp.dtype(output_batch.dtype).itemsize,
                      jnp.dtype(teacher_outputs.dtype).itemsize)

    vmem_cap = _vmem_capacity_bytes()
    budget = (int(vmem_budget_bytes) if vmem_budget_bytes is not None
              else int(vmem_cap * 0.45))

    n8 = _round_up(N, 8)

    # Decide whether the class dimension must be tiled (very large C).
    if C <= 128 or 8 * _bytes_per_row(C, in_itemsize) <= budget:
        c_block = C
    else:
        per_elem = 4 * in_itemsize + 4 * _F32_TEMPS
        c_cap = max(128, (budget // (8 * per_elem) // 128) * 128)
        c_cap = min(int(c_cap), C)
        c_block = None
        for cb in range(c_cap, 127, -128):
            if C % cb == 0:
                c_block = cb
                break
        if c_block is None:
            # TODO(synk): mask ragged class tiles instead of one full-row tile.
            c_block = C
    num_c_tiles = C // c_block if C % c_block == 0 else 1
    if num_c_tiles == 1:
        c_block = C

    rows_cap = max(8, budget // _bytes_per_row(c_block, in_itemsize))
    block_rows = _pick_block_rows(n8, rows_cap)
    n_pad = _round_up(N, block_rows)
    num_row_tiles = n_pad // block_rows

    student, teacher = output_batch, teacher_outputs
    if n_pad != N:
        # Zero-padded rows produce finite per-row values; they are sliced off
        # before the final sum, so no in-kernel masking is required.
        student = jnp.pad(student, ((0, n_pad - N), (0, 0)))
        teacher = jnp.pad(teacher, ((0, n_pad - N), (0, 0)))

    # Scoped VMEM sized to the actual step footprint, clamped per generation.
    step_bytes = block_rows * _bytes_per_row(c_block, in_itemsize)
    vmem_limit = int(min(max(step_bytes + (4 << 20), 32 << 20),
                         min((vmem_cap * 3) // 4, 96 << 20)))

    inv_t = 1.0 / float(temperature)

    if num_c_tiles == 1:
        kernel = functools.partial(_ce_rows_kernel, inv_t=inv_t)
        grid = (num_row_tiles,)
        in_specs = [pl.BlockSpec((block_rows, C), lambda i: (i, 0))] * 2
        out_specs = pl.BlockSpec((block_rows, 1), lambda i: (i, 0))
        scratch_shapes = []
        dim_sem = ("parallel",)
    else:
        kernel = functools.partial(_ce_online_kernel, inv_t=inv_t)
        grid = (num_row_tiles, num_c_tiles)
        in_specs = [pl.BlockSpec((block_rows, c_block), lambda i, j: (i, j))] * 2
        out_specs = pl.BlockSpec((block_rows, 1), lambda i, j: (i, 0))
        scratch_shapes = [pltpu.VMEM((block_rows, 1), jnp.float32)] * 5
        dim_sem = ("parallel", "arbitrary")

    per_row = pl.pallas_call(
        kernel,
        out_shape=jax.ShapeDtypeStruct((n_pad, 1), jnp.float32),
        grid_spec=pltpu.PrefetchScalarGridSpec(
            num_scalar_prefetch=0,
            grid=grid,
            in_specs=in_specs,
            out_specs=out_specs,
            scratch_shapes=scratch_shapes,
        ),
        compiler_params=pltpu.CompilerParams(
            dimension_semantics=dim_sem,
            vmem_limit_bytes=vmem_limit,
        ),
    )(student, teacher)

    # Final tiny reduction + fused (-T^2 / N) scale on the per-row partials.
    scale = -float(temperature) * float(temperature) / float(N)
    return scale * jnp.sum(per_row[:N, 0])


def _reference(student, teacher, T):
    student = student.astype(jnp.float32)
    teacher = teacher.astype(jnp.float32)
    log_p = jax.nn.log_softmax(student / T, axis=1)
    q = jax.nn.softmax(teacher / T, axis=1)
    return -T * T * jnp.sum(log_p * q) / student.shape[0]


if __name__ == "__main__":
    key = jax.random.PRNGKey(0)
    k1, k2, k3, k4, k5, k6 = jax.random.split(key, 6)

    # Test 1: small f32 shapes, single-tile single-pass path.
    N, C = 16, 128
    T = 2.0
    student = jax.random.normal(k1, (N, C), dtype=jnp.float32)
    teacher = jax.random.normal(k2, (N, C), dtype=jnp.float32)
    loss = jax.block_until_ready(ce_loss(student, teacher, temperature=T))
    ref = _reference(student, teacher, T)
    assert jnp.allclose(loss, ref, atol=1e-4, rtol=1e-4), (loss, ref)

    # Test 2: ragged batch (N=53 -> padded) + forced tiny budget to exercise the
    # class-tiled online-softmax kernel and the multi-row-tile "parallel" axis.
    N2, C2 = 53, 256
    student2 = jax.random.normal(k3, (N2, C2), dtype=jnp.float32) * 3.0
    teacher2 = jax.random.normal(k4, (N2, C2), dtype=jnp.float32) * 3.0
    loss2 = jax.block_until_ready(
        ce_loss(student2, teacher2, temperature=3.0, vmem_budget_bytes=64 * 1024))
    ref2 = _reference(student2, teacher2, 3.0)
    assert jnp.allclose(loss2, ref2, atol=1e-4, rtol=1e-4), (loss2, ref2)

    # Test 3: bf16 inputs (itemsize-aware sizing), T == 1 fast path.
    N3, C3 = 24, 128
    student3 = jax.random.normal(k5, (N3, C3), dtype=jnp.bfloat16)
    teacher3 = jax.random.normal(k6, (N3, C3), dtype=jnp.bfloat16)
    loss3 = jax.block_until_ready(ce_loss(student3, teacher3, temperature=1.0))
    ref3 = _reference(student3, teacher3, 1.0)
    assert jnp.allclose(loss3, ref3, atol=1e-4, rtol=1e-4), (loss3, ref3)

    print("KERNEL_OK")
</pallas_src>

<mosaic_0001>
module attributes {stable_mosaic.version = 11 : i64} {
  func.func @_ce_rows_kernel(%arg0: i32, %arg1: memref<16x128xf32, #tpu.memory_space<vmem>>, %arg2: memref<16x128xf32, #tpu.memory_space<vmem>>, %arg3: memref<16x1xf32, #tpu.memory_space<vmem>>) attributes {dimension_semantics = [#tpu.dimension_semantics<parallel>], iteration_bounds = array<i64: 1>, scalar_prefetch = 0 : i64, scratch_operands = 0 : i64, tpu.core_type = #tpu.core_type<tc>, window_params = [{transform_indices = @transform_0, window_bounds = array<i64: 16, 128>}, {transform_indices = @transform_1, window_bounds = array<i64: 16, 128>}, {transform_indices = @transform_2, window_bounds = array<i64: 16, 1>}]} {
    %c0 = arith.constant 0 : index
    %c0_0 = arith.constant 0 : index
    %0 = vector.load %arg1[%c0, %c0_0] : memref<16x128xf32, #tpu.memory_space<vmem>>, vector<16x128xf32>
    %c0_1 = arith.constant 0 : index
    %c0_2 = arith.constant 0 : index
    %1 = vector.load %arg2[%c0_1, %c0_2] : memref<16x128xf32, #tpu.memory_space<vmem>>, vector<16x128xf32>
    %cst = arith.constant 5.000000e-01 : f32
    %2 = vector.broadcast %cst : f32 to vector<16x128xf32>
    %3 = arith.mulf %0, %2 : vector<16x128xf32>
    %cst_3 = arith.constant 5.000000e-01 : f32
    %4 = vector.broadcast %cst_3 : f32 to vector<16x128xf32>
    %5 = arith.mulf %1, %4 : vector<16x128xf32>
    %cst_4 = arith.constant dense<0xFF800000> : vector<16xf32>
    %6 = vector.multi_reduction <maximumf>, %3, %cst_4 [1] : vector<16x128xf32> to vector<16xf32>
    %7 = vector.shape_cast %6 : vector<16xf32> to vector<16x1xf32>
    %8 = vector.broadcast %7 : vector<16x1xf32> to vector<16x128xf32>
    %9 = arith.subf %3, %8 : vector<16x128xf32>
    %10 = math.exp %9 : vector<16x128xf32>
    %cst_5 = arith.constant dense<0.000000e+00> : vector<16xf32>
    %11 = vector.multi_reduction <add>, %10, %cst_5 [1] : vector<16x128xf32> to vector<16xf32>
    %12 = vector.shape_cast %11 : vector<16xf32> to vector<16x1xf32>
    %13 = math.log %12 : vector<16x1xf32>
    %cst_6 = arith.constant dense<0xFF800000> : vector<16xf32>
    %14 = vector.multi_reduction <maximumf>, %5, %cst_6 [1] : vector<16x128xf32> to vector<16xf32>
    %15 = vector.shape_cast %14 : vector<16xf32> to vector<16x1xf32>
    %16 = vector.broadcast %15 : vector<16x1xf32> to vector<16x128xf32>
    %17 = arith.subf %5, %16 : vector<16x128xf32>
    %18 = math.exp %17 : vector<16x128xf32>
    %cst_7 = arith.constant dense<0.000000e+00> : vector<16xf32>
    %19 = vector.multi_reduction <add>, %18, %cst_7 [1] : vector<16x128xf32> to vector<16xf32>
    %20 = vector.shape_cast %19 : vector<16xf32> to vector<16x1xf32>
    %21 = arith.mulf %9, %18 : vector<16x128xf32>
    %cst_8 = arith.constant dense<0.000000e+00> : vector<16xf32>
    %22 = vector.multi_reduction <add>, %21, %cst_8 [1] : vector<16x128xf32> to vector<16xf32>
    %23 = vector.shape_cast %22 : vector<16xf32> to vector<16x1xf32>
    %24 = arith.divf %23, %20 : vector<16x1xf32>
    %25 = arith.subf %24, %13 : vector<16x1xf32>
    %c0_9 = arith.constant 0 : index
    %c0_10 = arith.constant 0 : index
    %26 = vector.load %arg3[%c0_9, %c0_10] : memref<16x1xf32, #tpu.memory_space<vmem>>, vector<16x1xf32>
    tpu.vector_store %arg3[%c0_9, %c0_10], %25 {strides = array<i32>} : memref<16x1xf32, #tpu.memory_space<vmem>>, vector<16x1xf32>,
    return
  }
  func.func @transform_0(%arg0: i32) -> (i32, i32) {
    %c0_i32 = arith.constant 0 : i32
    %c0_i32_0 = arith.constant 0 : i32
    return %arg0, %c0_i32 : i32, i32
  }
  func.func @transform_1(%arg0: i32) -> (i32, i32) {
    %c0_i32 = arith.constant 0 : i32
    %c0_i32_0 = arith.constant 0 : i32
    return %arg0, %c0_i32 : i32, i32
  }
  func.func @transform_2(%arg0: i32) -> (i32, i32) {
    %c0_i32 = arith.constant 0 : i32
    %c0_i32_0 = arith.constant 0 : i32
    return %arg0, %c0_i32 : i32, i32
  }
}

</mosaic_0001>

<llo_original>
// kernel: tpu_custom_call.1
$region0: #{tpu_custom_call.1}
  #allocation0 [shape = 'u32[]', space=smem, size = 0x4, offset = 0x4, fixed_abs, tag = 'smem constant byte address 0x4 - core index']
  #allocation1 [shape = 'u32[72,128]{1,0:T(1,128)}', space=vmem, size = 0x9000, scoped, tag = 'internal scratch']
  %s0 = inlined_call_operand.hbm [shape: f32[16,128], index: 0, kind: input, shape index: {}]
  %s1 = inlined_call_operand.hbm [shape: f32[16,128], index: 1, kind: input, shape index: {}]
  %s2 = inlined_call_operand.vmem [shape: f32[16,1], index: 2, kind: output, shape index: {}]
  %s3 = sld [smem:[#allocation0]]
  $region26: #{tpu_custom_call.1} parent=0
    _
  %s5 = ssub.s32 1, %s3
  %s6 = scalar_select 0, %s5, %s3
  $region1: #{tpu_custom_call.1} parent=0
    #allocation2 [shape = 'u8[8192]{0}', space=vmem, size = 0x2000, scoped, tag = 'input window, operand 0, single buffered']
    #allocation3 [shape = 's32[1]{0}', space=sflag, size = 0x4, scoped, tag = 'scoped memory for tpu_custom_call.1']
    #allocation4 [shape = 'u8[8192]{0}', space=vmem, size = 0x2000, scoped, tag = 'input window, operand 1, single buffered']
    #allocation5 [shape = 's32[1]{0}', space=sflag, size = 0x4, scoped, tag = 'scoped memory for tpu_custom_call.1']
    %7 = vsyncpa [#allocation3], 0
    %8 = vsyncpa [#allocation5], 0
    // Predicated region
    $region2: #{tpu_custom_call.1} parent=1 // pred_check
      _
    $region3: #{tpu_custom_call.1} parent=1 // pred_check_branch
      %10 = sbr.rel (0) target = $region5
    $region4: #{tpu_custom_call.1} parent=1 // pred_region
      %12 = vsyncadd [#allocation3], 0
      %s13 = sshll.u32 %s0, 4
      %s14 = int_to_ptr.hbm [resolvable:$true] %s13
      %s15 = sshll.u32 [#allocation2], 4
      %s16 = int_to_ptr.vmem [resolvable:$true] %s15
      %21 = dma.hbm_to_vmem [thread:$0]  %s14, 256, %s16, [#allocation3], 128, 128, 8
    $region5: #{tpu_custom_call.1} parent=1 // pred_fallthru
      _
    // Predicated region
    $region6: #{tpu_custom_call.1} parent=1 // pred_check
      _
    $region7: #{tpu_custom_call.1} parent=1 // pred_check_branch
      %23 = sbr.rel (0) target = $region9
    $region8: #{tpu_custom_call.1} parent=1 // pred_region
      %25 = vsyncadd [#allocation5], 0
      %s26 = sshll.u32 %s1, 4
      %s27 = int_to_ptr.hbm [resolvable:$true] %s26
      %s28 = sshll.u32 [#allocation4], 4
      %s29 = int_to_ptr.vmem [resolvable:$true] %s28
      %34 = dma.hbm_to_vmem [thread:$0]  %s27, 256, %s29, [#allocation5], 128, 128, 8
    $region9: #{tpu_custom_call.1} parent=1 // pred_fallthru
      _
    // Predicated region
    $region10: #{tpu_custom_call.1} parent=1 // pred_check
      _
    $region11: #{tpu_custom_call.1} parent=1 // pred_check_branch
      %36 = sbr.rel (0) target = $region13
    $region12: #{tpu_custom_call.1} parent=1 // pred_region
      %38 = dma.done [#allocation3], 256
    $region13: #{tpu_custom_call.1} parent=1 // pred_fallthru
      _
    // Predicated region
    $region14: #{tpu_custom_call.1} parent=1 // pred_check
      _
    $region15: #{tpu_custom_call.1} parent=1 // pred_check_branch
      %40 = sbr.rel (0) target = $region17
    $region16: #{tpu_custom_call.1} parent=1 // pred_region
      %42 = dma.done [#allocation5], 256
    $region17: #{tpu_custom_call.1} parent=1 // pred_fallthru
      _
    %v43 = vld [vmem:[#allocation2] sm:$0xff]
    %v44 = vld [vmem:[#allocation2 + $0x8] sm:$0xff]
    %v45 = vld [vmem:[#allocation4] sm:$0xff]
    %v46 = vld [vmem:[#allocation4 + $0x8] sm:$0xff]
    %v47 = vmul.f32 %v43, 0.5
    %v48 = vmul.f32 %v44, 0.5
    %v49 = vmul.f32 %v45, 0.5
    %v50 = vmul.f32 %v46, 0.5
    %51 = vmax.xlane.f32.xlu0 %v47
    %v52 = vpop.xlane.xlu0 %51
    %53 = vmax.xlane.f32.xlu0 %v48
    %v54 = vpop.xlane.xlu0 %53
    %v55 = vsub.f32 %v47, %v52
    %v56 = vsub.f32 %v48, %v54
    %v57 = vmul.f32 %v55, 1.442695
    %v58 = vpow.pop %v57
    %v59 = vmul.f32 %v56, 1.442695
    %v60 = vpow.pop %v59
    %61 = vadd.xlane.f32.xlu0 %v58
    %v62 = vpop.xlane.xlu0 %61
    %63 = vadd.xlane.f32.xlu0 %v60
    %v64 = vpop.xlane.xlu0 %63
    %v65 = vlog2.pop %v62
    %v66 = vmul.f32 %v65, 0.6931472
    %v67 = vlog2.pop %v64
    %v68 = vmul.f32 %v67, 0.6931472
    %69 = vmax.xlane.f32.xlu0 %v49
    %v70 = vpop.xlane.xlu0 %69
    %71 = vmax.xlane.f32.xlu0 %v50
    %v72 = vpop.xlane.xlu0 %71
    %v73 = vsub.f32 %v49, %v70
    %v74 = vsub.f32 %v50, %v72
    %v75 = vmul.f32 %v73, 1.442695
    %v76 = vpow.pop %v75
    %v77 = vmul.f32 %v74, 1.442695
    %v78 = vpow.pop %v77
    %79 = vadd.xlane.f32.xlu0 %v76
    %v80 = vpop.xlane.xlu0 %79
    %81 = vadd.xlane.f32.xlu0 %v78
    %v82 = vpop.xlane.xlu0 %81
    %v83 = vmul.f32 %v55, %v76
    %v84 = vmul.f32 %v56, %v78
    %85 = vadd.xlane.f32.xlu0 %v83
    %v86 = vpop.xlane.xlu0 %85
    %87 = vadd.xlane.f32.xlu0 %v84
    %v88 = vpop.xlane.xlu0 %87
    %v89 = vrcp.pop %v80
    %v90 = vmul.f32 %v80, %v89
    %v91 = vsub.f32 1.0, %v90
    %v92 = vmul.f32 %v89, %v91
    %v93 = vadd.f32 %v89, %v92
    %vm94 = vweird.f32 %v80
    %vm95 = vweird.f32 %v89
    %vm96 = vmor %vm94, %vm95
    %v97 = vsel %vm96, %v89, %v93
    %v98 = vand.u32 2147483647, %v80
    %vm99 = vcmp.eq.f32.partialorder %v98, 8.507059e+37
    %v100 = vand.u32 %v80, 2147483648
    %v101 = vor.u32 1.1754944e-38, %v100
    %v102 = vsel %vm99, %v101, %v97
    %v103 = vmul.f32 %v86, %v102
    %v104 = vrcp.pop %v82
    %v105 = vmul.f32 %v82, %v104
    %v106 = vsub.f32 1.0, %v105
    %v107 = vmul.f32 %v104, %v106
    %v108 = vadd.f32 %v104, %v107
    %vm109 = vweird.f32 %v82
    %vm110 = vweird.f32 %v104
    %vm111 = vmor %vm109, %vm110
    %v112 = vsel %vm111, %v104, %v108
    %v113 = vand.u32 2147483647, %v82
    %vm114 = vcmp.eq.f32.partialorder %v113, 8.507059e+37
    %v115 = vand.u32 %v82, 2147483648
    %v116 = vor.u32 1.1754944e-38, %v115
    %v117 = vsel %vm114, %v116, %v112
    %v118 = vmul.f32 %v88, %v117
    %v119 = vsub.f32 %v103, %v66
    %v120 = vsub.f32 %v118, %v68
    %vm121 = vcmask 7168
    %122 = vst.msk [vmem:[%s2] sm:$0xff] %vm121, %v119
    %123 = vst.msk [vmem:[%s2 + $0x8] sm:$0xff] %vm121, %v120
    // Predicated region
    $region18: #{tpu_custom_call.1} parent=1 // pred_check
      _
    $region19: #{tpu_custom_call.1} parent=1 // pred_check_branch
      %125 = sbr.rel (0) target = $region21
    $region20: #{tpu_custom_call.1} parent=1 // pred_region
      _
    $region21: #{tpu_custom_call.1} parent=1 // pred_fallthru
      _
    // Predicated region
    $region22: #{tpu_custom_call.1} parent=1 // pred_check
      _
    $region23: #{tpu_custom_call.1} parent=1 // pred_check_branch
      %127 = sbr.rel (0) target = $region25
    $region24: #{tpu_custom_call.1} parent=1 // pred_region
      _
    $region25: #{tpu_custom_call.1} parent=1 // pred_fallthru
      _
    %128 = vsyncpa [#allocation3], 1
    %129 = vsyncpa [#allocation5], 1

</llo_original>
